<compile_context>
chip_gen: v5e
topology: v5e:2x2
jax: 0.10.0
libtpu: 0.0.40
codegen_flags: <defaults>
</compile_context>

<pallas_src>
import functools

import jax
import jax.numpy as jnp
from jax.experimental import pallas as pl
from jax.experimental.pallas import tpu as pltpu


def _round_up(x: int, m: int) -> int:
    return ((x + m - 1) // m) * m


def _cdiv(a: int, b: int) -> int:
    return -(-a // b)


def _vmem_budget_bytes() -> int:
    """Working-set budget for resident weights + streamed tiles."""
    try:
        kind = jax.devices()[0].device_kind.lower()
    except Exception:  # pragma: no cover
        kind = ""
    if "v5" in kind or "v6" in kind:
        return 96 * 1024 * 1024      # 128 MiB physical VMEM
    return 40 * 1024 * 1024          # conservative (v7x has 64 MiB per TC)


def _ffn_kernel(x_ref, w1_ref, b1_ref, w2_ref, b2_ref, o_ref, acc_ref, *, n_p):
    # Per grid step:
    #   x_ref  : (TM, Hp)       streamed row tile (pipeline double-buffered)
    #   w1_ref : (n_p, Hp, TP)  VMEM-resident, single copy
    #   b1_ref : (n_p, 1,  TP)  f32
    #   w2_ref : (n_p, TP, Hp)  VMEM-resident, single copy
    #   b2_ref : (1, Hp)        f32
    #   o_ref  : (TM, Hp)
    #   acc_ref: (TM, Hp) f32 scratch (used only when n_p > 1)
    x = x_ref[...]

    if n_p == 1:
        # Single-chunk fast path: no scratch round-trip.
        h = jnp.dot(x, w1_ref[0], preferred_element_type=jnp.float32)
        h = jnp.maximum(h + b1_ref[0], 0.0)                      # bias + relu in f32
        y = jnp.dot(h.astype(w2_ref.dtype), w2_ref[0],
                    preferred_element_type=jnp.float32)
        o_ref[...] = (y + b2_ref[...]).astype(o_ref.dtype)
        return

    acc_ref[...] = jnp.zeros_like(acc_ref)

    def chunk(p, carry):
        # h_chunk = relu(x @ W1[:, p*TP:(p+1)*TP] + b1[p])   -> (TM, TP) f32
        h = jnp.dot(x, w1_ref[p], preferred_element_type=jnp.float32)
        h = jnp.maximum(h + b1_ref[p], 0.0)
        # acc += h_chunk @ W2[p*TP:(p+1)*TP, :]
        acc_ref[...] += jnp.dot(h.astype(w2_ref.dtype), w2_ref[p],
                                preferred_element_type=jnp.float32)
        return carry

    jax.lax.fori_loop(0, n_p, chunk, 0, unroll=(n_p <= 4))
    o_ref[...] = (acc_ref[...] + b2_ref[...]).astype(o_ref.dtype)


@functools.partial(jax.jit, static_argnames=("tile_m", "compute_dtype"))
def positionwise_feedforward(x, w1, b1, w2, b2, *, tile_m=None,
                             compute_dtype=jnp.bfloat16):
    """x: [B, S, H] -> [B, S, H].  w1: [H, P], b1: [P], w2: [P, H], b2: [H].

    tile_m:        row-tile size hint for the streamed B*S dimension (auto if None).
    compute_dtype: MXU input dtype (default bf16, f32 accumulation). Use
                   jnp.float32 for bit-accurate-to-f32 results.
    """
    B, S, H = x.shape
    P = w1.shape[1]
    M = B * S
    out_dtype = x.dtype

    cdt = jnp.dtype(compute_dtype if compute_dtype is not None else x.dtype)

    x2d = x.reshape(M, H).astype(cdt)
    w1c = w1.astype(cdt)
    w2c = w2.astype(cdt)

    # --- Lane alignment: pad H and P to multiples of 128 (zero padding is inert).
    Hp = _round_up(H, 128)
    Pp = _round_up(P, 128)

    # --- pf_dim chunking: keep the live (TM, TP) f32 intermediate small while the
    #     weights stay fully VMEM-resident.
    if Pp <= 512:
        TP = Pp
    else:
        TP = 128
        for cand in (512, 384, 256):
            if Pp % cand == 0:
                TP = cand
                break
    n_p = Pp // TP

    sublane = 16 if cdt == jnp.bfloat16 else 8
    x_item = cdt.itemsize
    w_item = cdt.itemsize
    out_item = jnp.dtype(out_dtype).itemsize

    budget = _vmem_budget_bytes()
    if tile_m is None:
        tile_m = 512 if budget > 64 * 1024 * 1024 else 256

    # --- VMEM working set: resident single-buffered weights + per-row streaming cost.
    weights_bytes = 2 * Hp * Pp * w_item + (Pp + Hp) * 4
    per_row = (2 * Hp * x_item        # double-buffered x tile
               + 2 * Hp * out_item    # double-buffered out tile
               + Hp * 4               # f32 accumulator scratch
               + TP * 4 + TP * w_item)  # live h chunk (f32 + bf16 cast copy)
    avail = budget - weights_bytes - 2 * 1024 * 1024
    if avail > per_row * sublane:
        tm_fit = (avail // per_row) // sublane * sublane
    else:
        tm_fit = sublane
    TM = max(sublane, min(_round_up(tile_m, sublane), tm_fit))
    TM = min(TM, _round_up(M, sublane))
    # v7x megacore: give the "parallel" M axis at least 2 tiles whenever possible.
    if M >= 2 * sublane and _cdiv(M, TM) < 2:
        TM = _round_up(_cdiv(M, 2), sublane)
    Mp = _round_up(M, TM)

    # --- Padding (skipped entirely when shapes are already aligned).
    if Mp != M or Hp != H:
        x_p = jnp.pad(x2d, ((0, Mp - M), (0, Hp - H)))
    else:
        x_p = x2d
    if Hp != H or Pp != P:
        w1c = jnp.pad(w1c, ((0, Hp - H), (0, Pp - P)))
        w2c = jnp.pad(w2c, ((0, Pp - P), (0, Hp - H)))
    b1f = b1.astype(jnp.float32)
    b2f = b2.astype(jnp.float32)
    if Pp != P:
        b1f = jnp.pad(b1f, (0, Pp - P))
    if Hp != H:
        b2f = jnp.pad(b2f, (0, Hp - H))

    # Chunk layout along pf_dim so the kernel indexes chunks on the leading axis.
    w1_p = w1c.reshape(Hp, n_p, TP).transpose(1, 0, 2)   # (n_p, Hp, TP)
    w2_p = w2c.reshape(n_p, TP, Hp)                       # (n_p, TP, Hp)
    b1_p = b1f.reshape(n_p, 1, TP)                        # (n_p, 1, TP)
    b2_p = b2f.reshape(1, Hp)                             # (1, Hp)

    grid = (Mp // TM,)

    vmem_limit = weights_bytes + TM * per_row + 8 * 1024 * 1024
    vmem_limit = int(min(max(vmem_limit, 32 * 1024 * 1024), 110 * 1024 * 1024))

    cost = pl.CostEstimate(
        flops=4 * M * H * P,
        transcendentals=0,
        bytes_accessed=int(M * H * (x_item + out_item)
                           + 2 * H * P * w_item + (P + H) * 4),
    )

    out2d = pl.pallas_call(
        functools.partial(_ffn_kernel, n_p=n_p),
        out_shape=jax.ShapeDtypeStruct((Mp, Hp), out_dtype),
        grid=grid,
        in_specs=[
            # Streamed row tiles of x (double-buffered by the pipeline).
            pl.BlockSpec((TM, Hp), lambda i: (i, 0)),
            # Weights / biases: whole-array VMEM residents (no 2x pipeline buffers).
            pl.BlockSpec(memory_space=pltpu.MemorySpace.VMEM),
            pl.BlockSpec(memory_space=pltpu.MemorySpace.VMEM),
            pl.BlockSpec(memory_space=pltpu.MemorySpace.VMEM),
            pl.BlockSpec(memory_space=pltpu.MemorySpace.VMEM),
        ],
        out_specs=pl.BlockSpec((TM, Hp), lambda i: (i, 0)),
        scratch_shapes=[pltpu.VMEM((TM, Hp), jnp.float32)],
        compiler_params=pltpu.CompilerParams(
            dimension_semantics=("parallel",),   # independent row tiles (megacore)
            vmem_limit_bytes=vmem_limit,
        ),
        cost_estimate=cost,
    )(x_p, w1_p, b1_p, w2_p, b2_p)

    if Mp != M or Hp != H:
        out2d = out2d[:M, :H]
    return out2d.reshape(B, S, H)


def _reference(x, w1, b1, w2, b2):
    B, S, H = x.shape
    h = jnp.maximum(x.reshape(-1, H) @ w1 + b1, 0.0)
    return (h @ w2 + b2).reshape(B, S, H)


if __name__ == "__main__":
    key = jax.random.PRNGKey(0)

    # Small shapes consistent with the module: batch=2, seq=8, hid_dim=32, pf_dim=64.
    B, S, HID, PF = 2, 8, 32, 64
    kx, kw1, kb1, kw2, kb2, kx2 = jax.random.split(key, 6)
    x = jax.random.normal(kx, (B, S, HID), dtype=jnp.float32)
    w1 = jax.random.normal(kw1, (HID, PF), dtype=jnp.float32) * (1.0 / jnp.sqrt(HID))
    b1 = jax.random.normal(kb1, (PF,), dtype=jnp.float32) * 0.01
    w2 = jax.random.normal(kw2, (PF, HID), dtype=jnp.float32) * (1.0 / jnp.sqrt(PF))
    b2 = jax.random.normal(kb2, (HID,), dtype=jnp.float32) * 0.01

    ref = _reference(x, w1, b1, w2, b2)

    # --- Test 1: exact f32 path; TM shrinks to 8 so the parallel M axis has 2 tiles.
    out_f32 = positionwise_feedforward(x, w1, b1, w2, b2, compute_dtype=jnp.float32)
    jax.block_until_ready(out_f32)
    assert jnp.allclose(out_f32, ref, atol=1e-5, rtol=1e-5), "mismatch (f32 path)"

    # --- Test 2: default bf16 MXU path (f32 accumulation); looser tolerance.
    out_bf16 = positionwise_feedforward(x, w1, b1, w2, b2)
    jax.block_until_ready(out_bf16)
    assert jnp.allclose(out_bf16, ref, atol=2.5e-1, rtol=5e-2), "mismatch (bf16 path)"

    # --- Test 3: ragged M (2*37 = 74 rows) with a small row tile: padded,
    #             multi-tile streamed path.
    x2 = jax.random.normal(kx2, (2, 37, HID), dtype=jnp.float32)
    ref2 = _reference(x2, w1, b1, w2, b2)
    out2 = positionwise_feedforward(x2, w1, b1, w2, b2, tile_m=16,
                                    compute_dtype=jnp.float32)
    jax.block_until_ready(out2)
    assert jnp.allclose(out2, ref2, atol=1e-5, rtol=1e-5), "mismatch (ragged path)"

    print("KERNEL_OK")
</pallas_src>

<mosaic_0001>
module attributes {stable_mosaic.version = 11 : i64} {
  func.func @_ffn_kernel(%arg0: i32, %arg1: memref<8x128xf32, #tpu.memory_space<vmem>>, %arg2: memref<1x128x128xf32, #tpu.memory_space<vmem>>, %arg3: memref<1x1x128xf32, #tpu.memory_space<vmem>>, %arg4: memref<1x128x128xf32, #tpu.memory_space<vmem>>, %arg5: memref<1x128xf32, #tpu.memory_space<vmem>>, %arg6: memref<8x128xf32, #tpu.memory_space<vmem>>, %arg7: memref<8x128xf32, #tpu.memory_space<vmem>>) attributes {dimension_semantics = [#tpu.dimension_semantics<parallel>], iteration_bounds = array<i64: 2>, scalar_prefetch = 0 : i64, scratch_operands = 1 : i64, tpu.core_type = #tpu.core_type<tc>, window_params = [{transform_indices = @transform_0, window_bounds = array<i64: 8, 128>}, {pipeline_mode = #tpu.pipeline_mode<synchronous>, transform_indices = @transform_1, window_bounds = array<i64: 1, 128, 128>}, {pipeline_mode = #tpu.pipeline_mode<synchronous>, transform_indices = @transform_2, window_bounds = array<i64: 1, 1, 128>}, {pipeline_mode = #tpu.pipeline_mode<synchronous>, transform_indices = @transform_3, window_bounds = array<i64: 1, 128, 128>}, {pipeline_mode = #tpu.pipeline_mode<synchronous>, transform_indices = @transform_4, window_bounds = array<i64: 1, 128>}, {transform_indices = @transform_5, window_bounds = array<i64: 8, 128>}]} {
    %c0 = arith.constant 0 : index
    %c0_0 = arith.constant 0 : index
    %0 = vector.load %arg1[%c0, %c0_0] : memref<8x128xf32, #tpu.memory_space<vmem>>, vector<8x128xf32>
    %c0_1 = arith.constant 0 : index
    %c0_2 = arith.constant 0 : index
    %c0_3 = arith.constant 0 : index
    %1 = vector.load %arg2[%c0_1, %c0_2, %c0_3] : memref<1x128x128xf32, #tpu.memory_space<vmem>>, vector<1x128x128xf32>
    %2 = vector.shape_cast %1 : vector<1x128x128xf32> to vector<128x128xf32>
    %cst = arith.constant dense<0.000000e+00> : vector<8x128xf32>
    %3 = tpu.matmul %0, %2, %cst {dimension_numbers = #tpu.dot_dimension_numbers<[1], [0], [0], [1], [0, 0, 1, 1], [], []>} : vector<8x128xf32>, vector<128x128xf32>, vector<8x128xf32> -> vector<8x128xf32>
    %c0_4 = arith.constant 0 : index
    %c0_5 = arith.constant 0 : index
    %c0_6 = arith.constant 0 : index
    %4 = vector.load %arg3[%c0_4, %c0_5, %c0_6] : memref<1x1x128xf32, #tpu.memory_space<vmem>>, vector<1x1x128xf32>
    %5 = vector.shape_cast %4 : vector<1x1x128xf32> to vector<1x128xf32>
    %6 = vector.broadcast %5 : vector<1x128xf32> to vector<8x128xf32>
    %7 = arith.addf %3, %6 : vector<8x128xf32>
    %cst_7 = arith.constant 0.000000e+00 : f32
    %8 = vector.broadcast %cst_7 : f32 to vector<8x128xf32>
    %9 = arith.maximumf %7, %8 : vector<8x128xf32>
    %c0_8 = arith.constant 0 : index
    %c0_9 = arith.constant 0 : index
    %c0_10 = arith.constant 0 : index
    %10 = vector.load %arg4[%c0_8, %c0_9, %c0_10] : memref<1x128x128xf32, #tpu.memory_space<vmem>>, vector<1x128x128xf32>
    %11 = vector.shape_cast %10 : vector<1x128x128xf32> to vector<128x128xf32>
    %cst_11 = arith.constant dense<0.000000e+00> : vector<8x128xf32>
    %12 = tpu.matmul %9, %11, %cst_11 {dimension_numbers = #tpu.dot_dimension_numbers<[1], [0], [0], [1], [0, 0, 1, 1], [], []>} : vector<8x128xf32>, vector<128x128xf32>, vector<8x128xf32> -> vector<8x128xf32>
    %c0_12 = arith.constant 0 : index
    %c0_13 = arith.constant 0 : index
    %13 = vector.load %arg5[%c0_12, %c0_13] : memref<1x128xf32, #tpu.memory_space<vmem>>, vector<1x128xf32>
    %14 = vector.broadcast %13 : vector<1x128xf32> to vector<8x128xf32>
    %15 = arith.addf %12, %14 : vector<8x128xf32>
    %c0_14 = arith.constant 0 : index
    %c0_15 = arith.constant 0 : index
    %16 = vector.load %arg6[%c0_14, %c0_15] : memref<8x128xf32, #tpu.memory_space<vmem>>, vector<8x128xf32>
    tpu.vector_store %arg6[%c0_14, %c0_15], %15 {strides = array<i32>} : memref<8x128xf32, #tpu.memory_space<vmem>>, vector<8x128xf32>,
    return
  }
  func.func @transform_0(%arg0: i32) -> (i32, i32) {
    %c0_i32 = arith.constant 0 : i32
    %c0_i32_0 = arith.constant 0 : i32
    return %arg0, %c0_i32 : i32, i32
  }
  func.func @transform_1(%arg0: i32) -> (i32, i32, i32) {
    %c0_i32 = arith.constant 0 : i32
    %c0_i32_0 = arith.constant 0 : i32
    %c0_i32_1 = arith.constant 0 : i32
    %c0_i32_2 = arith.constant 0 : i32
    return %c0_i32, %c0_i32_0, %c0_i32_1 : i32, i32, i32
  }
  func.func @transform_2(%arg0: i32) -> (i32, i32, i32) {
    %c0_i32 = arith.constant 0 : i32
    %c0_i32_0 = arith.constant 0 : i32
    %c0_i32_1 = arith.constant 0 : i32
    %c0_i32_2 = arith.constant 0 : i32
    return %c0_i32, %c0_i32_0, %c0_i32_1 : i32, i32, i32
  }
  func.func @transform_3(%arg0: i32) -> (i32, i32, i32) {
    %c0_i32 = arith.constant 0 : i32
    %c0_i32_0 = arith.constant 0 : i32
    %c0_i32_1 = arith.constant 0 : i32
    %c0_i32_2 = arith.constant 0 : i32
    return %c0_i32, %c0_i32_0, %c0_i32_1 : i32, i32, i32
  }
  func.func @transform_4(%arg0: i32) -> (i32, i32) {
    %c0_i32 = arith.constant 0 : i32
    %c0_i32_0 = arith.constant 0 : i32
    %c0_i32_1 = arith.constant 0 : i32
    return %c0_i32, %c0_i32_0 : i32, i32
  }
  func.func @transform_5(%arg0: i32) -> (i32, i32) {
    %c0_i32 = arith.constant 0 : i32
    %c0_i32_0 = arith.constant 0 : i32
    return %arg0, %c0_i32 : i32, i32
  }
}

</mosaic_0001>

<llo_original>
// kernel: positionwise_feedforward.1
$region0: #{positionwise_feedforward.1}
  #allocation0 [shape = 'u32[]', space=smem, size = 0x4, offset = 0x4, fixed_abs, tag = 'smem constant byte address 0x4 - core index']
  #allocation1 [shape = 'u32[72,128]{1,0:T(1,128)}', space=vmem, size = 0x9000, scoped, tag = 'internal scratch']
  #allocation2 [shape = 'f32[8,128]{1,0:T(8,128)}', space=vmem, size = 0x1000, scoped, tag = 'scratch operand']
  %s0 = inlined_call_operand.vmem [shape: f32[16,128], index: 0, kind: input, shape index: {}]
  %s1 = inlined_call_operand.vmem [shape: f32[1,128,128], index: 1, kind: input, shape index: {}]
  %s2 = inlined_call_operand.vmem [shape: f32[1,1,128], index: 2, kind: input, shape index: {}]
  %s3 = inlined_call_operand.vmem [shape: f32[1,128,128], index: 3, kind: input, shape index: {}]
  %s4 = inlined_call_operand.vmem [shape: f32[1,128], index: 4, kind: input, shape index: {}]
  %s5 = inlined_call_operand.vmem [shape: f32[16,128], index: 5, kind: output, shape index: {}]
  %s6 = sld [smem:[#allocation0]]
  $region53: #{positionwise_feedforward.1} parent=0
    _
  %s8 = ssub.s32 1, %s6
  %s9 = scalar_select 0, %s8, %s6
  loop: start=0, step=1, limit=4
  $region2: #{positionwise_feedforward.1} parent=0 // loop_pre_header
    _
  $region3: #{positionwise_feedforward.1} parent=0 // loop_header
    %s11 = sphi 0, %s15
    %p12 = scmp.ge.s32.totalorder %s11, 4
    %s21 = sphi 0, %s23
    %s24 = sphi 0, %s21
    %s25 = sphi 0, %s24
    %s41 = sphi 0, %s25
    %s45 = sphi 0, %s45
    %s47 = sphi 0, %s45
    %s48 = sphi 0, %s47
    %s62 = sphi 0, %s48
    %s66 = sphi 0, %s66
    %s68 = sphi 0, %s66
    %s69 = sphi 0, %s68
    %s83 = sphi 0, %s69
    %s87 = sphi 0, %s87
    %s89 = sphi 0, %s87
    %s90 = sphi 0, %s89
    %s104 = sphi 0, %s90
    %s108 = sphi 0, %s108
    %s110 = sphi 0, %s108
    %s111 = sphi 0, %s110
    %s125 = sphi 0, %s111
    %s131 = sphi 0, %s133
    %s134 = sphi 0, %s131
    %s135 = sphi 0, %s134
    %s151 = sphi 0, %s135
  $region4: #{positionwise_feedforward.1} parent=0 // loop_header_branch
    %14 = sbr.rel (%p12) target = $region8
  $region5: #{positionwise_feedforward.1} parent=0 // loop_body
    %s16 = ssub.s32 %s11, 1
    %s17 = ssub.s32 %s11, 2
    %s18 = sadd.s32 %s11, 1
    %s19 = ssub.s32 %s11, %s18
    %p20 = scmp.eq.s32.totalorder %s19, 0
    %s22 = sadd.s32 %s21, 1
    %s23 = scalar_select %p20, %s21, %s22
    %p26 = pneg %p20
    %p27 = scmp.eq.s32.totalorder %s11, 1
    %p28 = por %p26, %p27
    %p29 = scmp.ne.s32.totalorder %s21, %s24
    %p30 = scmp.eq.s32.totalorder %s11, 0
    %p31 = por %p29, %p30
    %p32 = scmp.ne.s32.totalorder %s21, %s24
    %p33 = scmp.eq.s32.totalorder %s16, 1
    %p34 = por %p32, %p33
    %p35 = scmp.ne.s32.totalorder %s24, %s25
    %p36 = scmp.eq.s32.totalorder %s16, 0
    %p37 = por %p35, %p36
    %p38 = scmp.ne.s32.totalorder %s24, %s25
    %p39 = scmp.eq.s32.totalorder %s17, 1
    %p40 = por %p38, %p39
    %p42 = scmp.ne.s32.totalorder %s25, %s41
    %p43 = scmp.eq.s32.totalorder %s17, 0
    %p44 = por %p42, %p43
    %s46 = sadd.s32 %s45, 1
    %p49 = scmp.eq.s32.totalorder %s11, 1
    %p50 = scmp.ne.s32.totalorder %s45, %s47
    %p51 = scmp.eq.s32.totalorder %s11, 0
    %p52 = por %p50, %p51
    %p53 = scmp.ne.s32.totalorder %s45, %s47
    %p54 = scmp.eq.s32.totalorder %s16, 1
    %p55 = por %p53, %p54
    %p56 = scmp.ne.s32.totalorder %s47, %s48
    %p57 = scmp.eq.s32.totalorder %s16, 0
    %p58 = por %p56, %p57
    %p59 = scmp.ne.s32.totalorder %s47, %s48
    %p60 = scmp.eq.s32.totalorder %s17, 1
    %p61 = por %p59, %p60
    %p63 = scmp.ne.s32.totalorder %s48, %s62
    %p64 = scmp.eq.s32.totalorder %s17, 0
    %p65 = por %p63, %p64
    %s67 = sadd.s32 %s66, 1
    %p70 = scmp.eq.s32.totalorder %s11, 1
    %p71 = scmp.ne.s32.totalorder %s66, %s68
    %p72 = scmp.eq.s32.totalorder %s11, 0
    %p73 = por %p71, %p72
    %p74 = scmp.ne.s32.totalorder %s66, %s68
    %p75 = scmp.eq.s32.totalorder %s16, 1
    %p76 = por %p74, %p75
    %p77 = scmp.ne.s32.totalorder %s68, %s69
    %p78 = scmp.eq.s32.totalorder %s16, 0
    %p79 = por %p77, %p78
    %p80 = scmp.ne.s32.totalorder %s68, %s69
    %p81 = scmp.eq.s32.totalorder %s17, 1
    %p82 = por %p80, %p81
    %p84 = scmp.ne.s32.totalorder %s69, %s83
    %p85 = scmp.eq.s32.totalorder %s17, 0
    %p86 = por %p84, %p85
    %s88 = sadd.s32 %s87, 1
    %p91 = scmp.eq.s32.totalorder %s11, 1
    %p92 = scmp.ne.s32.totalorder %s87, %s89
    %p93 = scmp.eq.s32.totalorder %s11, 0
    %p94 = por %p92, %p93
    %p95 = scmp.ne.s32.totalorder %s87, %s89
    %p96 = scmp.eq.s32.totalorder %s16, 1
    %p97 = por %p95, %p96
    %p98 = scmp.ne.s32.totalorder %s89, %s90
    %p99 = scmp.eq.s32.totalorder %s16, 0
    %p100 = por %p98, %p99
    %p101 = scmp.ne.s32.totalorder %s89, %s90
    %p102 = scmp.eq.s32.totalorder %s17, 1
    %p103 = por %p101, %p102
    %p105 = scmp.ne.s32.totalorder %s90, %s104
    %p106 = scmp.eq.s32.totalorder %s17, 0
    %p107 = por %p105, %p106
    %s109 = sadd.s32 %s108, 1
    %p112 = scmp.eq.s32.totalorder %s11, 1
    %p113 = scmp.ne.s32.totalorder %s108, %s110
    %p114 = scmp.eq.s32.totalorder %s11, 0
    %p115 = por %p113, %p114
    %p116 = scmp.ne.s32.totalorder %s108, %s110
    %p117 = scmp.eq.s32.totalorder %s16, 1
    %p118 = por %p116, %p117
    %p119 = scmp.ne.s32.totalorder %s110, %s111
    %p120 = scmp.eq.s32.totalorder %s16, 0
    %p121 = por %p119, %p120
    %p122 = scmp.ne.s32.totalorder %s110, %s111
    %p123 = scmp.eq.s32.totalorder %s17, 1
    %p124 = por %p122, %p123
    %p126 = scmp.ne.s32.totalorder %s111, %s125
    %p127 = scmp.eq.s32.totalorder %s17, 0
    %p128 = por %p126, %p127
    %s129 = ssub.s32 %s11, %s18
    %p130 = scmp.eq.s32.totalorder %s129, 0
    %s132 = sadd.s32 %s131, 1
    %s133 = scalar_select %p130, %s131, %s132
    %p136 = pneg %p130
    %p137 = scmp.eq.s32.totalorder %s11, 1
    %p138 = por %p136, %p137
    %p139 = scmp.ne.s32.totalorder %s131, %s134
    %p140 = scmp.eq.s32.totalorder %s11, 0
    %p141 = por %p139, %p140
    %p142 = scmp.ne.s32.totalorder %s131, %s134
    %p143 = scmp.eq.s32.totalorder %s16, 1
    %p144 = por %p142, %p143
    %p145 = scmp.ne.s32.totalorder %s134, %s135
    %p146 = scmp.eq.s32.totalorder %s16, 0
    %p147 = por %p145, %p146
    %p148 = scmp.ne.s32.totalorder %s134, %s135
    %p149 = scmp.eq.s32.totalorder %s17, 1
    %p150 = por %p148, %p149
    %p152 = scmp.ne.s32.totalorder %s135, %s151
    %p153 = scmp.eq.s32.totalorder %s17, 0
    %p154 = por %p152, %p153
    %p155 = scmp.le.s32.totalorder 1, %s11
    %p156 = scmp.lt.s32.totalorder %s11, 3
    %p157 = pnand %p155, %p156
    %p158 = pneg %p157
    // Predicated region
    $region9: #{positionwise_feedforward.1} parent=5 // pred_check
      _
    $region10: #{positionwise_feedforward.1} parent=5 // pred_check_branch
      %160 = sbr.rel (%p157) target = $region12
    $region11: #{positionwise_feedforward.1} parent=5 // pred_region
      %s161 = ssub.s32 %s11, 1
      // Predicated region
      $region13: #{positionwise_feedforward.1} parent=11 // pred_check
        %p162 = pneg %p58
      $region14: #{positionwise_feedforward.1} parent=11 // pred_check_branch
        %164 = sbr.rel (%p162) target = $region16
      $region15: #{positionwise_feedforward.1} parent=11 // pred_region
        _
      $region16: #{positionwise_feedforward.1} parent=11 // pred_fallthru
        _
      // Predicated region
      $region17: #{positionwise_feedforward.1} parent=11 // pred_check
        %p165 = pneg %p79
      $region18: #{positionwise_feedforward.1} parent=11 // pred_check_branch
        %167 = sbr.rel (%p165) target = $region20
      $region19: #{positionwise_feedforward.1} parent=11 // pred_region
        _
      $region20: #{positionwise_feedforward.1} parent=11 // pred_fallthru
        _
      // Predicated region
      $region21: #{positionwise_feedforward.1} parent=11 // pred_check
        %p168 = pneg %p100
      $region22: #{positionwise_feedforward.1} parent=11 // pred_check_branch
        %170 = sbr.rel (%p168) target = $region24
      $region23: #{positionwise_feedforward.1} parent=11 // pred_region
        _
      $region24: #{positionwise_feedforward.1} parent=11 // pred_fallthru
        _
      // Predicated region
      $region25: #{positionwise_feedforward.1} parent=11 // pred_check
        %p171 = pneg %p121
      $region26: #{positionwise_feedforward.1} parent=11 // pred_check_branch
        %173 = sbr.rel (%p171) target = $region28
      $region27: #{positionwise_feedforward.1} parent=11 // pred_region
        _
      $region28: #{positionwise_feedforward.1} parent=11 // pred_fallthru
        _
    $region12: #{positionwise_feedforward.1} parent=5 // pred_fallthru
      _
    %p174 = scmp.lt.s32.totalorder %s11, 2
    // Predicated region
    $region29: #{positionwise_feedforward.1} parent=5 // pred_check
      %p175 = pneg %p174
    $region30: #{positionwise_feedforward.1} parent=5 // pred_check_branch
      %177 = sbr.rel (%p175) target = $region32
    $region31: #{positionwise_feedforward.1} parent=5 // pred_region
      // Predicated region
      $region33: #{positionwise_feedforward.1} parent=31 // pred_check
        %p178 = pneg %p31
      $region34: #{positionwise_feedforward.1} parent=31 // pred_check_branch
        %180 = sbr.rel (%p178) target = $region36
      $region35: #{positionwise_feedforward.1} parent=31 // pred_region
        %p181 = scmp.lt.s32.totalorder %s11, 1
        %s182 = scalar_select %p181, %s11, 1
        %s183 = smul.addr %s182, 8
        %s184 = scalar_lea.vmem %s0, %s183
      $region36: #{positionwise_feedforward.1} parent=31 // pred_fallthru
        _
    $region32: #{positionwise_feedforward.1} parent=5 // pred_fallthru
      _
    %p185 = scmp.le.s32.totalorder 1, %s11
    %p186 = scmp.lt.s32.totalorder %s11, 3
    %p187 = pnand %p185, %p186
    %p188 = pneg %p187
    // Predicated region
    $region37: #{positionwise_feedforward.1} parent=5 // pred_check
      _
    $region38: #{positionwise_feedforward.1} parent=5 // pred_check_branch
      %190 = sbr.rel (%p187) target = $region40
    $region39: #{positionwise_feedforward.1} parent=5 // pred_region
      %s191 = ssub.s32 %s11, 1
      %p192 = scmp.lt.s32.totalorder %s16, 1
      %s193 = scalar_select %p192, %s16, 1
      %s194 = smul.addr %s193, 8
      %s195 = scalar_lea.vmem %s0, %s194
      %p196 = pneg %p37
      %p197 = pneg %p34
      %p198 = pneg %p58
      %p199 = pneg %p55
      %p200 = pneg %p79
      %p201 = pneg %p76
      %p202 = pneg %p100
      %p203 = pneg %p97
      %p204 = pneg %p121
      %p205 = pneg %p118
      %p206 = pneg %p147
      %p207 = pneg %p144
      %p208 = scmp.lt.s32.totalorder %s16, 1
      %s209 = scalar_select %p208, %s16, 1
      %s210 = smul.addr %s209, 8
      %s211 = scalar_lea.vmem %s5, %s210
      %p212 = scmp.lt.s32.totalorder %s16, 1
      %s213 = scalar_select %p212, %s16, 1
      %s214 = smul.addr %s213, 8
      %s215 = scalar_lea.vmem %s0, %s214
      %p216 = scmp.lt.s32.totalorder %s16, 1
      %s217 = scalar_select %p216, %s16, 1
      %s218 = smul.addr %s217, 8
      %s219 = scalar_lea.vmem %s5, %s218
      %v220 = vld [vmem:[%s215] sm:$0xff]
      %v221 = vld [vmem:[%s1] sm:$0xff]
      %v222 = vld [vmem:[%s1 + $0x8] sm:$0xff]
      %v223 = vld [vmem:[%s1 + $0x10] sm:$0xff]
      %v224 = vld [vmem:[%s1 + $0x18] sm:$0xff]
      %v225 = vld [vmem:[%s1 + $0x20] sm:$0xff]
      %v226 = vld [vmem:[%s1 + $0x28] sm:$0xff]
      %v227 = vld [vmem:[%s1 + $0x30] sm:$0xff]
      %v228 = vld [vmem:[%s1 + $0x38] sm:$0xff]
      %v229 = vld [vmem:[%s1 + $0x40] sm:$0xff]
      %v230 = vld [vmem:[%s1 + $0x48] sm:$0xff]
      %v231 = vld [vmem:[%s1 + $0x50] sm:$0xff]
      %v232 = vld [vmem:[%s1 + $0x58] sm:$0xff]
      %v233 = vld [vmem:[%s1 + $0x60] sm:$0xff]
      %v234 = vld [vmem:[%s1 + $0x68] sm:$0xff]
      %v235 = vld [vmem:[%s1 + $0x70] sm:$0xff]
      %v236 = vld [vmem:[%s1 + $0x78] sm:$0xff]
      %v237 = vld [vmem:[%s2] sm:$0x1]
      %v239 = vperm.slane %v237, 0
      %241 = vmatpush.msra.mxu0 %v236
      %242 = vmatpush.msra.mxu0 %v235
      %243 = vmatpush.msra.mxu0 %v234
      %244 = vmatpush.msra.mxu0 %v233
      %245 = vmatpush.msra.mxu0 %v232
      %246 = vmatpush.msra.mxu0 %v231
      %247 = vmatpush.msra.mxu0 %v230
      %248 = vmatpush.msra.mxu0 %v229
      %249 = vmatpush.msra.mxu0 %v228
      %250 = vmatpush.msra.mxu0 %v227
      %251 = vmatpush.msra.mxu0 %v226
      %252 = vmatpush.msra.mxu0 %v225
      %253 = vmatpush.msra.mxu0 %v224
      %254 = vmatpush.msra.mxu0 %v223
      %255 = vmatpush.msra.mxu0 %v222
      %256 = vmatpush.msra.mxu0 %v221
      %257 = vmatmul.f32.gmra.mxu0 %v220
      %v258 = vpop.f32.mrf.mxu0
      %v259 = vadd.f32 %v239, %v258
      %260 = vdwg.mxu0
      %v261 = vmax.f32 %v259, 0.0
      %v262 = vld [vmem:[%s3] sm:$0xff]
      %v263 = vld [vmem:[%s3 + $0x8] sm:$0xff]
      %v264 = vld [vmem:[%s3 + $0x10] sm:$0xff]
      %v265 = vld [vmem:[%s3 + $0x18] sm:$0xff]
      %v266 = vld [vmem:[%s3 + $0x20] sm:$0xff]
      %v267 = vld [vmem:[%s3 + $0x28] sm:$0xff]
      %v268 = vld [vmem:[%s3 + $0x30] sm:$0xff]
      %v269 = vld [vmem:[%s3 + $0x38] sm:$0xff]
      %v270 = vld [vmem:[%s3 + $0x40] sm:$0xff]
      %v271 = vld [vmem:[%s3 + $0x48] sm:$0xff]
      %v272 = vld [vmem:[%s3 + $0x50] sm:$0xff]
      %v273 = vld [vmem:[%s3 + $0x58] sm:$0xff]
      %v274 = vld [vmem:[%s3 + $0x60] sm:$0xff]
      %v275 = vld [vmem:[%s3 + $0x68] sm:$0xff]
      %v276 = vld [vmem:[%s3 + $0x70] sm:$0xff]
      %v277 = vld [vmem:[%s3 + $0x78] sm:$0xff]
      %v278 = vld [vmem:[%s4] sm:$0x1]
      %v280 = vperm.slane %v278, 0
      %282 = vmatpush.msra.mxu0 %v277
      %283 = vmatpush.msra.mxu0 %v276
      %284 = vmatpush.msra.mxu0 %v275
      %285 = vmatpush.msra.mxu0 %v274
      %286 = vmatpush.msra.mxu0 %v273
      %287 = vmatpush.msra.mxu0 %v272
      %288 = vmatpush.msra.mxu0 %v271
      %289 = vmatpush.msra.mxu0 %v270
      %290 = vmatpush.msra.mxu0 %v269
      %291 = vmatpush.msra.mxu0 %v268
      %292 = vmatpush.msra.mxu0 %v267
      %293 = vmatpush.msra.mxu0 %v266
      %294 = vmatpush.msra.mxu0 %v265
      %295 = vmatpush.msra.mxu0 %v264
      %296 = vmatpush.msra.mxu0 %v263
      %297 = vmatpush.msra.mxu0 %v262
      %298 = vmatmul.f32.gmra.mxu0 %v261
      %v299 = vpop.f32.mrf.mxu0
      %v300 = vadd.f32 %v280, %v299
      %301 = vdwg.mxu0
      %302 = vst [vmem:[%s219] sm:$0xff] %v300
      %p303 = scmp.lt.s32.totalorder %s16, 1
      %s304 = scalar_select %p303, %s16, 1
      %s305 = smul.addr %s304, 8
      %s306 = scalar_lea.vmem %s5, %s305
      // Predicated region
      $region41: #{positionwise_feedforward.1} parent=39 // pred_check
        %p307 = pneg %p144
      $region42: #{positionwise_feedforward.1} parent=39 // pred_check_branch
        %309 = sbr.rel (%p307) target = $region44
      $region43: #{positionwise_feedforward.1} parent=39 // pred_region
        _
      $region44: #{positionwise_feedforward.1} parent=39 // pred_fallthru
        _
    $region40: #{positionwise_feedforward.1} parent=5 // pred_fallthru
      _
    %p310 = scmp.le.s32.totalorder 2, %s11
    // Predicated region
    $region45: #{positionwise_feedforward.1} parent=5 // pred_check
      %p311 = pneg %p310
    $region46: #{positionwise_feedforward.1} parent=5 // pred_check_branch
      %313 = sbr.rel (%p311) target = $region48
    $region47: #{positionwise_feedforward.1} parent=5 // pred_region
      %s314 = ssub.s32 %s11, 2
      // Predicated region
      $region49: #{positionwise_feedforward.1} parent=47 // pred_check
        %p315 = pneg %p150
      $region50: #{positionwise_feedforward.1} parent=47 // pred_check_branch
        %317 = sbr.rel (%p315) target = $region52
      $region51: #{positionwise_feedforward.1} parent=47 // pred_region
        %p318 = scmp.lt.s32.totalorder %s17, 1
        %s319 = scalar_select %p318, %s17, 1
        %s320 = smul.addr %s319, 8
        %s321 = scalar_lea.vmem %s5, %s320
      $region52: #{positionwise_feedforward.1} parent=47 // pred_fallthru
        _
    $region48: #{positionwise_feedforward.1} parent=5 // pred_fallthru
      _
  $region6: #{positionwise_feedforward.1} parent=0 // loop_footer
    %s15 = sadd.s32 1, %s11
  $region7: #{positionwise_feedforward.1} parent=0 // loop_footer_branch
    %10 = sbr.rel target = $region3
  $region8: #{positionwise_feedforward.1} parent=0 // loop_exit
    _

</llo_original>
